<compile_context>
chip_gen: v6e
topology: v6e:2x2x1
jax: 0.10.0
libtpu: 0.0.40
codegen_flags: <defaults>
</compile_context>

<pallas_src>
import jax
import jax.numpy as jnp
from jax import lax
from jax.experimental import pallas as pl
from jax.experimental.pallas import tpu as pltpu


# ----------------------------- tiling helpers --------------------------------

def _pick_hw_tile(hw, max_tile=256):
    """Largest multiple-of-8 divisor of `hw` that is <= max_tile and yields at
    least 2 pipeline steps along HW when hw allows it. Falls back to the full
    dimension (always a legal block) when hw has no multiple-of-8 divisor."""
    if hw % 8 != 0:
        return hw
    cap = min(max_tile, hw // 2 if hw >= 16 else hw)
    cap = max(cap - cap % 8, 8)
    for t in range(cap, 7, -8):
        if hw % t == 0:
            return t
    return hw


# ------------------------------ Pallas kernel ---------------------------------

def cam_head(feature_nhwc, w_cls, *, block_b=1, cams_dtype=jnp.bfloat16):
    """CAM head.

    feature_nhwc: (B, H, W, C) stage-4 feature (bf16 preferred; cast otherwise)
    w_cls:        (K, C) classifier weight (1x1 conv, no bias)

    Returns (logits (B,K) f32, cams_feature (B,K,C) f32, cams (B,K,H,W)).
    """
    B, H, W, C = feature_nhwc.shape
    K = w_cls.shape[0]
    HW = H * W
    Kp = pl.cdiv(K, 128) * 128        # lane-pad class dim (MXU / vst width)
    Ks = pl.cdiv(K, 8) * 8            # sublane-pad only, for the cf output
    assert B % block_b == 0
    t_hw = _pick_hw_tile(HW)
    n_hw = HW // t_hw
    inv_hw = 1.0 / float(HW)

    # Feature should already be bf16 (emitted by the backbone); cast only if not.
    f_flat = feature_nhwc.reshape(B, HW, C)
    if f_flat.dtype != jnp.bfloat16:
        f_flat = f_flat.astype(jnp.bfloat16)

    # Classifier weight transposed to (C, Kp), zero-padded classes, bf16.
    w_t = jnp.zeros((C, Kp), jnp.bfloat16).at[:, :K].set(
        jnp.transpose(w_cls).astype(jnp.bfloat16))

    def kernel(f_ref, wt_ref, logit_ref, cf_ref, cams_ref, cmax_ref):
        # f_ref:     (Bb, t_hw, C)  bf16      feature tile (C on lanes)
        # wt_ref:    (C, Kp)        bf16      classifier weight (transposed)
        # logit_ref: (Bb, 1, Kp)    f32       revisited: running score sum -> mean
        # cf_ref:    (Bb, Ks, C)    f32       revisited: unnormalized cams_feature
        # cams_ref:  (Bb, HW, Kp)   bf16/f32  revisited: full CAM block
        # cmax_ref:  (Bb, 1, Kp)    f32       revisited: per-class spatial max
        h = pl.program_id(1)
        n_h = pl.num_programs(1)

        @pl.when(h == 0)
        def _():
            logit_ref[...] = jnp.zeros_like(logit_ref)
            cf_ref[...] = jnp.zeros_like(cf_ref)
            cmax_ref[...] = jnp.zeros_like(cmax_ref)

        f = f_ref[...]                                     # (Bb, t_hw, C)
        w = wt_ref[...]                                    # (C, Kp)
        bb = f.shape[0]

        # scores[b,h,k] = sum_c f[b,h,c] * w[c,k]: one wide MXU matmul, f32 acc.
        scores = jnp.dot(f.reshape(bb * t_hw, C), w,
                         preferred_element_type=jnp.float32
                         ).reshape(bb, t_hw, Kp)
        relu_s = jnp.maximum(scores, 0.0)                  # f32 elementwise

        # GAP numerator (logits = mean_hw(scores); mean is linear) and running
        # per-class spatial max, both in revisited (VMEM-resident) outputs.
        logit_ref[...] = logit_ref[...] + jnp.sum(scores, axis=1, keepdims=True)
        cmax_ref[...] = jnp.maximum(cmax_ref[...],
                                    jnp.max(relu_s, axis=1, keepdims=True))

        # Unnormalized CAM tile written into the resident cams block; the
        # per-class 1/(max+eps) scale is applied once in the epilogue below.
        start = h * t_hw
        if t_hw % 8 == 0:
            start = pl.multiple_of(start, 8)
        cams_ref[:, pl.ds(start, t_hw), :] = relu_s.astype(cams_ref.dtype)

        # cams_feature accumulation with the normalization factored out:
        #   cf[k,c] = 1/(HW*(max_k+eps)) * sum_h relu(s)[h,k] * f[h,c]
        # Only the first Ks (= round_up(K,8)) class rows are stored.
        # (Contraction is over the sublane (h) axis of both operands; per the
        #  review this should be checked with pl.lower_as_mlir -- if Mosaic
        #  relayouts the feature operand, pre-transpose the small relu_s tile
        #  instead. Kept in the known-good einsum form here.)
        cf_tile = jnp.einsum("bhk,bhc->bkc", relu_s.astype(jnp.bfloat16), f,
                             preferred_element_type=jnp.float32)
        cf_ref[...] += cf_tile[:, :Ks, :]

        @pl.when(h == n_h - 1)
        def _():
            logit_ref[...] = logit_ref[...] * inv_hw
            # EUP approximate reciprocal: rides an otherwise-idle bundle slot.
            inv_mx = pl.reciprocal(cmax_ref[...] + 1e-5, approx=True)
            cams_ref[...] = (cams_ref[...].astype(jnp.float32) * inv_mx
                             ).astype(cams_ref.dtype)

    # Explicit VMEM budget from the actual block sizes (double-buffered I/O +
    # f32 temporaries) with 2x headroom, floored at 32 MiB (> v5e's 16 MiB
    # scoped default) and capped at 64 MiB (v7x physical VMEM per TensorCore).
    cams_isize = jnp.dtype(cams_dtype).itemsize
    io_bytes = (block_b * t_hw * C * 2            # feature tile (bf16)
                + C * Kp * 2                      # classifier weight (bf16)
                + block_b * Kp * 4                # logits accumulator
                + block_b * Ks * C * 4            # cams_feature accumulator
                + block_b * HW * Kp * cams_isize  # resident cams block
                + block_b * Kp * 4)               # per-class max
    tmp_bytes = block_b * (3 * t_hw * Kp * 4 + Kp * C * 4)
    vmem_limit = 2 * (2 * io_bytes + tmp_bytes) + (4 << 20)
    vmem_limit = int(min(max(vmem_limit, 32 << 20), 64 << 20))

    logit_out, cf_out, cams_out, cmax_out = pl.pallas_call(
        kernel,
        out_shape=(jax.ShapeDtypeStruct((B, 1, Kp), jnp.float32),
                   jax.ShapeDtypeStruct((B, Ks, C), jnp.float32),
                   jax.ShapeDtypeStruct((B, HW, Kp), cams_dtype),
                   jax.ShapeDtypeStruct((B, 1, Kp), jnp.float32)),
        grid_spec=pltpu.PrefetchScalarGridSpec(
            num_scalar_prefetch=0,
            grid=(B // block_b, n_hw),
            in_specs=[pl.BlockSpec((block_b, t_hw, C), lambda b, h: (b, h, 0)),
                      pl.BlockSpec((C, Kp), lambda b, h: (0, 0))],
            out_specs=[pl.BlockSpec((block_b, 1, Kp), lambda b, h: (b, 0, 0)),
                       pl.BlockSpec((block_b, Ks, C), lambda b, h: (b, 0, 0)),
                       pl.BlockSpec((block_b, HW, Kp), lambda b, h: (b, 0, 0)),
                       pl.BlockSpec((block_b, 1, Kp), lambda b, h: (b, 0, 0))]),
        # Batch axis "parallel" (v7x megacore shards b blocks across its two
        # TensorCores); HW axis "arbitrary" (reduction / revisited outputs).
        # Tuning notes: v5e -> pick block_b so block_b*t_hw >= 256 rows; v7x ->
        # halve whatever block_b / t_hw is tuned for v6e (half the VMEM per TC).
        compiler_params=pltpu.CompilerParams(
            dimension_semantics=("parallel", "arbitrary"),
            vmem_limit_bytes=vmem_limit),
    )(f_flat, w_t)

    logits = logit_out[:, 0, :K]                                # (B, K)
    # cams_feature: exact per-class scale applied to the unnormalized sum
    # (tiny (B,K,C) elementwise pass; avoids an in-kernel lane->sublane
    # relayout of the max vector).
    scale = (1.0 / (cmax_out[:, 0, :K] + 1e-5)) * inv_hw        # (B, K)
    cams_feature = cf_out[:, :K, :] * scale[:, :, None]         # (B, K, C)
    # HW is generally not a clean lane width, so the (HW,Kp)->(Kp,HW)
    # transpose stays in the wrapper (per review guidance).
    cams = jnp.transpose(cams_out[:, :, :K], (0, 2, 1)).reshape(B, K, H, W)
    return logits, cams_feature, cams


# --------------------------- glue (plain JAX) ---------------------------------

def backbone_standin(x, w_patch):
    """Deterministic stand-in for ResNet-50 stage1..stage4 (overall stride 16).

    x: (B, 3, H, W) NCHW ; w_patch: (C_FEAT, 3, 16, 16) OIHW.
    Returns a bf16 NHWC feature (B, H/16, W/16, C_FEAT): channels land on
    lanes for the Pallas kernel, and the bf16 cast fuses into the conv/ReLU
    epilogue instead of being a separate pass over the dominant HBM stream.
    """
    y = lax.conv_general_dilated(
        x, w_patch, window_strides=(16, 16), padding="VALID",
        dimension_numbers=("NCHW", "OIHW", "NHWC"))
    return jax.nn.relu(y).astype(jnp.bfloat16)


def cam_forward(x, params):
    feature = backbone_standin(x, params["w_patch"])
    return cam_head(feature, params["w_cls"])


# -------------------------------- reference -----------------------------------

def cam_head_ref(feature_nhwc, w_cls):
    """Plain-JAX reference of the head, mirroring the kernel's bf16 MXU-input
    casts (f32 math elsewhere) so the remaining deviations are the approximate
    reciprocal, bf16 cams storage, and accumulation order."""
    B, H, W, C = feature_nhwc.shape
    f = feature_nhwc.astype(jnp.float32)                         # bf16 values
    w = w_cls.astype(jnp.bfloat16).astype(jnp.float32)           # (K, C)

    gap = f.mean(axis=(1, 2))                                    # (B, C)
    logits = gap @ w.T                                           # (B, K)

    scores = jnp.einsum("kc,bhwc->bkhw", w, f)
    relu_s = jax.nn.relu(scores)
    mx = relu_s.max(axis=(2, 3), keepdims=True)                  # (B, K, 1, 1)
    cams = relu_s / (mx + 1e-5)

    # Mirrors the kernel's cf path: bf16 relu-score operand, exact scale.
    cf_raw = jnp.einsum("bkhw,bhwc->bkc",
                        relu_s.astype(jnp.bfloat16).astype(jnp.float32), f)
    cf = cf_raw / (H * W) / (mx[:, :, 0, 0][..., None] + 1e-5)
    return logits, cf, cams


# ----------------------------------- main --------------------------------------

if __name__ == "__main__":
    B, C_IN, IMG = 2, 3, 64          # small synthetic image
    C_FEAT = 256                     # scaled-down stand-in for 2048 channels
    N_CLASSES = 20

    key = jax.random.PRNGKey(0)
    k_x, k_patch, k_cls = jax.random.split(key, 3)

    x = jax.random.normal(k_x, (B, C_IN, IMG, IMG), dtype=jnp.float32)
    params = {
        "w_patch": jax.random.normal(k_patch, (C_FEAT, C_IN, 16, 16),
                                     jnp.float32) * 0.05,
        "w_cls": jax.random.normal(k_cls, (N_CLASSES, C_FEAT),
                                   jnp.float32) * 0.05,
    }

    logits, cams_feature, cams = jax.block_until_ready(cam_forward(x, params))

    # correctness check against a plain-JAX reference of the head
    feature = backbone_standin(x, params["w_patch"])             # bf16 NHWC
    logits_r, cf_r, cams_r = cam_head_ref(feature, params["w_cls"])

    Hf = IMG // 16
    assert logits.shape == (B, N_CLASSES)
    assert cams_feature.shape == (B, N_CLASSES, C_FEAT)
    assert cams.shape == (B, N_CLASSES, Hf, Hf)

    # logits: f32-accumulated MXU result vs reference -> tight.
    assert jnp.allclose(logits, logits_r, rtol=1e-4, atol=1e-4)
    # cams: tolerance covers the EUP approximate reciprocal + bf16 storage.
    assert jnp.allclose(cams.astype(jnp.float32), cams_r, rtol=1e-2, atol=1e-2)
    # cams_feature: exact normalization in the wrapper; tolerance covers the
    # bf16 MXU operand casts (mirrored in the reference) and accumulation order.
    assert jnp.allclose(cams_feature, cf_r, rtol=5e-3, atol=5e-3)

    print("KERNEL_OK")
</pallas_src>

<mosaic_0001>
module attributes {stable_mosaic.version = 11 : i64} {
  func.func @kernel(%arg0: i32, %arg1: i32, %arg2: memref<1x8x256xbf16, #tpu.memory_space<vmem>>, %arg3: memref<256x128xbf16, #tpu.memory_space<vmem>>, %arg4: memref<1x1x128xf32, #tpu.memory_space<vmem>>, %arg5: memref<1x24x256xf32, #tpu.memory_space<vmem>>, %arg6: memref<1x16x128xbf16, #tpu.memory_space<vmem>>, %arg7: memref<1x1x128xf32, #tpu.memory_space<vmem>>) attributes {dimension_semantics = [#tpu.dimension_semantics<parallel>, #tpu.dimension_semantics<arbitrary>], iteration_bounds = array<i64: 2, 2>, scalar_prefetch = 0 : i64, scratch_operands = 0 : i64, tpu.core_type = #tpu.core_type<tc>, window_params = [{transform_indices = @transform_0, window_bounds = array<i64: 1, 8, 256>}, {pipeline_mode = #tpu.pipeline_mode<synchronous>, transform_indices = @transform_1, window_bounds = array<i64: 256, 128>}, {transform_indices = @transform_2, window_bounds = array<i64: 1, 1, 128>}, {transform_indices = @transform_3, window_bounds = array<i64: 1, 24, 256>}, {transform_indices = @transform_4, window_bounds = array<i64: 1, 16, 128>}, {transform_indices = @transform_5, window_bounds = array<i64: 1, 1, 128>}]} {
    %c0_i32 = arith.constant 0 : i32
    %0 = arith.cmpi eq, %arg1, %c0_i32 : i32
    %1 = arith.extui %0 : i1 to i32
    %c0_i32_0 = arith.constant 0 : i32
    %2 = arith.cmpi ne, %1, %c0_i32_0 : i32
    scf.if %2 {
      %cst_30 = arith.constant 0.000000e+00 : f32
      %34 = vector.broadcast %cst_30 : f32 to vector<1x1x128xf32>
      %c0_31 = arith.constant 0 : index
      %c0_32 = arith.constant 0 : index
      %c0_33 = arith.constant 0 : index
      %35 = vector.load %arg4[%c0_31, %c0_32, %c0_33] : memref<1x1x128xf32, #tpu.memory_space<vmem>>, vector<1x1x128xf32>
      tpu.vector_store %arg4[%c0_31, %c0_32, %c0_33], %34 {strides = array<i32>} : memref<1x1x128xf32, #tpu.memory_space<vmem>>, vector<1x1x128xf32>,
      %cst_34 = arith.constant 0.000000e+00 : f32
      %36 = vector.broadcast %cst_34 : f32 to vector<1x24x256xf32>
      %c0_35 = arith.constant 0 : index
      %c0_36 = arith.constant 0 : index
      %c0_37 = arith.constant 0 : index
      %37 = vector.load %arg5[%c0_35, %c0_36, %c0_37] : memref<1x24x256xf32, #tpu.memory_space<vmem>>, vector<1x24x256xf32>
      tpu.vector_store %arg5[%c0_35, %c0_36, %c0_37], %36 {strides = array<i32>} : memref<1x24x256xf32, #tpu.memory_space<vmem>>, vector<1x24x256xf32>,
      %cst_38 = arith.constant 0.000000e+00 : f32
      %38 = vector.broadcast %cst_38 : f32 to vector<1x1x128xf32>
      %c0_39 = arith.constant 0 : index
      %c0_40 = arith.constant 0 : index
      %c0_41 = arith.constant 0 : index
      %39 = vector.load %arg7[%c0_39, %c0_40, %c0_41] : memref<1x1x128xf32, #tpu.memory_space<vmem>>, vector<1x1x128xf32>
      tpu.vector_store %arg7[%c0_39, %c0_40, %c0_41], %38 {strides = array<i32>} : memref<1x1x128xf32, #tpu.memory_space<vmem>>, vector<1x1x128xf32>,
    } else {
    }
    %c0 = arith.constant 0 : index
    %c0_1 = arith.constant 0 : index
    %c0_2 = arith.constant 0 : index
    %3 = vector.load %arg2[%c0, %c0_1, %c0_2] : memref<1x8x256xbf16, #tpu.memory_space<vmem>>, vector<1x8x256xbf16>
    %c0_3 = arith.constant 0 : index
    %c0_4 = arith.constant 0 : index
    %4 = vector.load %arg3[%c0_3, %c0_4] : memref<256x128xbf16, #tpu.memory_space<vmem>>, vector<256x128xbf16>
    %5 = vector.shape_cast %3 : vector<1x8x256xbf16> to vector<8x256xbf16>
    %cst = arith.constant dense<0.000000e+00> : vector<8x128xf32>
    %6 = tpu.matmul %5, %4, %cst {dimension_numbers = #tpu.dot_dimension_numbers<[1], [0], [0], [1], [0, 0, 1, 1], [], []>} : vector<8x256xbf16>, vector<256x128xbf16>, vector<8x128xf32> -> vector<8x128xf32>
    %7 = vector.shape_cast %6 : vector<8x128xf32> to vector<1x8x128xf32>
    %cst_5 = arith.constant 0.000000e+00 : f32
    %8 = vector.broadcast %cst_5 : f32 to vector<1x8x128xf32>
    %9 = arith.maximumf %7, %8 : vector<1x8x128xf32>
    %c0_6 = arith.constant 0 : index
    %c0_7 = arith.constant 0 : index
    %c0_8 = arith.constant 0 : index
    %10 = vector.load %arg4[%c0_6, %c0_7, %c0_8] : memref<1x1x128xf32, #tpu.memory_space<vmem>>, vector<1x1x128xf32>
    %cst_9 = arith.constant dense<0.000000e+00> : vector<1x128xf32>
    %11 = vector.multi_reduction <add>, %7, %cst_9 [1] : vector<1x8x128xf32> to vector<1x128xf32>
    %12 = vector.shape_cast %11 : vector<1x128xf32> to vector<1x1x128xf32>
    %13 = arith.addf %10, %12 : vector<1x1x128xf32>
    %c0_10 = arith.constant 0 : index
    %c0_11 = arith.constant 0 : index
    %c0_12 = arith.constant 0 : index
    %14 = vector.load %arg4[%c0_10, %c0_11, %c0_12] : memref<1x1x128xf32, #tpu.memory_space<vmem>>, vector<1x1x128xf32>
    tpu.vector_store %arg4[%c0_10, %c0_11, %c0_12], %13 {strides = array<i32>} : memref<1x1x128xf32, #tpu.memory_space<vmem>>, vector<1x1x128xf32>,
    %c0_13 = arith.constant 0 : index
    %c0_14 = arith.constant 0 : index
    %c0_15 = arith.constant 0 : index
    %15 = vector.load %arg7[%c0_13, %c0_14, %c0_15] : memref<1x1x128xf32, #tpu.memory_space<vmem>>, vector<1x1x128xf32>
    %cst_16 = arith.constant dense<0xFF800000> : vector<1x128xf32>
    %16 = vector.multi_reduction <maximumf>, %9, %cst_16 [1] : vector<1x8x128xf32> to vector<1x128xf32>
    %17 = vector.shape_cast %16 : vector<1x128xf32> to vector<1x1x128xf32>
    %18 = arith.maximumf %15, %17 : vector<1x1x128xf32>
    %c0_17 = arith.constant 0 : index
    %c0_18 = arith.constant 0 : index
    %c0_19 = arith.constant 0 : index
    %19 = vector.load %arg7[%c0_17, %c0_18, %c0_19] : memref<1x1x128xf32, #tpu.memory_space<vmem>>, vector<1x1x128xf32>
    tpu.vector_store %arg7[%c0_17, %c0_18, %c0_19], %18 {strides = array<i32>} : memref<1x1x128xf32, #tpu.memory_space<vmem>>, vector<1x1x128xf32>,
    %c8_i32 = arith.constant 8 : i32
    %20 = arith.muli %arg1, %c8_i32 : i32
    %21 = tpu.assume_multiple %20, 8 : i32
    %22 = arith.truncf %9 : vector<1x8x128xf32> to vector<1x8x128xbf16>
    %c0_20 = arith.constant 0 : index
    %23 = arith.index_cast %21 : i32 to index
    %c0_21 = arith.constant 0 : index
    %24 = vector.load %arg6[%c0_20, %23, %c0_21] : memref<1x16x128xbf16, #tpu.memory_space<vmem>>, vector<1x8x128xbf16>
    tpu.vector_store %arg6[%c0_20, %23, %c0_21], %22 {strides = array<i32>} : memref<1x16x128xbf16, #tpu.memory_space<vmem>>, vector<1x8x128xbf16>,
    %25 = arith.truncf %9 : vector<1x8x128xf32> to vector<1x8x128xbf16>
    "tpu.trace_start"() <{level = 10 : i32, message = "bhk,bhc->bkc"}> : () -> ()
    %cst_22 = arith.constant dense<0.000000e+00> : vector<1x128x256xf32>
    %26 = tpu.matmul %25, %3, %cst_22 {dimension_numbers = #tpu.dot_dimension_numbers<[1], [1], [2], [2], [0, 0, 0, 2, 1, 2], [0], [0]>} : vector<1x8x128xbf16>, vector<1x8x256xbf16>, vector<1x128x256xf32> -> vector<1x128x256xf32>
    "tpu.trace_stop"() : () -> ()
    %c0_23 = arith.constant 0 : index
    %c0_24 = arith.constant 0 : index
    %c0_25 = arith.constant 0 : index
    %27 = vector.load %arg5[%c0_23, %c0_24, %c0_25] : memref<1x24x256xf32, #tpu.memory_space<vmem>>, vector<1x24x256xf32>
    %28 = vector.extract_strided_slice %26 {offsets = [0, 0, 0], sizes = [1, 24, 256], strides = [1, 1, 1]} : vector<1x128x256xf32> to vector<1x24x256xf32>
    %29 = arith.addf %27, %28 : vector<1x24x256xf32>
    %c0_26 = arith.constant 0 : index
    %c0_27 = arith.constant 0 : index
    %c0_28 = arith.constant 0 : index
    %30 = vector.load %arg5[%c0_26, %c0_27, %c0_28] : memref<1x24x256xf32, #tpu.memory_space<vmem>>, vector<1x24x256xf32>
    tpu.vector_store %arg5[%c0_26, %c0_27, %c0_28], %29 {strides = array<i32>} : memref<1x24x256xf32, #tpu.memory_space<vmem>>, vector<1x24x256xf32>,
    %c1_i32 = arith.constant 1 : i32
    %31 = arith.cmpi eq, %arg1, %c1_i32 : i32
    %32 = arith.extui %31 : i1 to i32
    %c0_i32_29 = arith.constant 0 : i32
    %33 = arith.cmpi ne, %32, %c0_i32_29 : i32
    scf.if %33 {
      %c0_30 = arith.constant 0 : index
      %c0_31 = arith.constant 0 : index
      %c0_32 = arith.constant 0 : index
      %34 = vector.load %arg4[%c0_30, %c0_31, %c0_32] : memref<1x1x128xf32, #tpu.memory_space<vmem>>, vector<1x1x128xf32>
      %cst_33 = arith.constant 6.250000e-02 : f32
      %35 = vector.broadcast %cst_33 : f32 to vector<1x1x128xf32>
      %36 = arith.mulf %34, %35 : vector<1x1x128xf32>
      %c0_34 = arith.constant 0 : index
      %c0_35 = arith.constant 0 : index
      %c0_36 = arith.constant 0 : index
      %37 = vector.load %arg4[%c0_34, %c0_35, %c0_36] : memref<1x1x128xf32, #tpu.memory_space<vmem>>, vector<1x1x128xf32>
      tpu.vector_store %arg4[%c0_34, %c0_35, %c0_36], %36 {strides = array<i32>} : memref<1x1x128xf32, #tpu.memory_space<vmem>>, vector<1x1x128xf32>,
      %c0_37 = arith.constant 0 : index
      %c0_38 = arith.constant 0 : index
      %c0_39 = arith.constant 0 : index
      %38 = vector.load %arg7[%c0_37, %c0_38, %c0_39] : memref<1x1x128xf32, #tpu.memory_space<vmem>>, vector<1x1x128xf32>
      %cst_40 = arith.constant 9.99999974E-6 : f32
      %39 = vector.broadcast %cst_40 : f32 to vector<1x1x128xf32>
      %40 = arith.addf %38, %39 : vector<1x1x128xf32>
      %41 = tpu.reciprocal %40 {approx = true} : vector<1x1x128xf32> -> vector<1x1x128xf32>
      %c0_41 = arith.constant 0 : index
      %c0_42 = arith.constant 0 : index
      %c0_43 = arith.constant 0 : index
      %42 = vector.load %arg6[%c0_41, %c0_42, %c0_43] : memref<1x16x128xbf16, #tpu.memory_space<vmem>>, vector<1x16x128xbf16>
      %43 = arith.extf %42 : vector<1x16x128xbf16> to vector<1x16x128xf32>
      %44 = vector.broadcast %41 : vector<1x1x128xf32> to vector<1x16x128xf32>
      %45 = arith.mulf %43, %44 : vector<1x16x128xf32>
      %46 = arith.truncf %45 : vector<1x16x128xf32> to vector<1x16x128xbf16>
      %c0_44 = arith.constant 0 : index
      %c0_45 = arith.constant 0 : index
      %c0_46 = arith.constant 0 : index
      %47 = vector.load %arg6[%c0_44, %c0_45, %c0_46] : memref<1x16x128xbf16, #tpu.memory_space<vmem>>, vector<1x16x128xbf16>
      tpu.vector_store %arg6[%c0_44, %c0_45, %c0_46], %46 {strides = array<i32>} : memref<1x16x128xbf16, #tpu.memory_space<vmem>>, vector<1x16x128xbf16>,
    } else {
    }
    return
  }
  func.func @transform_0(%arg0: i32, %arg1: i32) -> (i32, i32, i32) {
    %c0_i32 = arith.constant 0 : i32
    %c0_i32_0 = arith.constant 0 : i32
    return %arg0, %arg1, %c0_i32 : i32, i32, i32
  }
  func.func @transform_1(%arg0: i32, %arg1: i32) -> (i32, i32) {
    %c0_i32 = arith.constant 0 : i32
    %c0_i32_0 = arith.constant 0 : i32
    %c0_i32_1 = arith.constant 0 : i32
    return %c0_i32, %c0_i32_0 : i32, i32
  }
  func.func @transform_2(%arg0: i32, %arg1: i32) -> (i32, i32, i32) {
    %c0_i32 = arith.constant 0 : i32
    %c0_i32_0 = arith.constant 0 : i32
    %c0_i32_1 = arith.constant 0 : i32
    return %arg0, %c0_i32, %c0_i32_0 : i32, i32, i32
  }
  func.func @transform_3(%arg0: i32, %arg1: i32) -> (i32, i32, i32) {
    %c0_i32 = arith.constant 0 : i32
    %c0_i32_0 = arith.constant 0 : i32
    %c0_i32_1 = arith.constant 0 : i32
    return %arg0, %c0_i32, %c0_i32_0 : i32, i32, i32
  }
  func.func @transform_4(%arg0: i32, %arg1: i32) -> (i32, i32, i32) {
    %c0_i32 = arith.constant 0 : i32
    %c0_i32_0 = arith.constant 0 : i32
    %c0_i32_1 = arith.constant 0 : i32
    return %arg0, %c0_i32, %c0_i32_0 : i32, i32, i32
  }
  func.func @transform_5(%arg0: i32, %arg1: i32) -> (i32, i32, i32) {
    %c0_i32 = arith.constant 0 : i32
    %c0_i32_0 = arith.constant 0 : i32
    %c0_i32_1 = arith.constant 0 : i32
    return %arg0, %c0_i32, %c0_i32_0 : i32, i32, i32
  }
}

</mosaic_0001>

<llo_original>
// kernel: tpu_custom_call.1
$region0: #{tpu_custom_call.1}
  #allocation0 [shape = 'u32[]', space=smem, size = 0x4, offset = 0x4, fixed_abs, tag = 'smem constant byte address 0x4 - core index']
  #allocation1 [shape = 'u32[144,128]{1,0:T(1,128)}', space=vmem, size = 0x12000, scoped, tag = 'internal scratch']
  %s0 = inlined_call_operand.hbm [shape: bf16[2,16,256], index: 0, kind: input, shape index: {}]
  %s1 = inlined_call_operand.hbm [shape: bf16[256,128], index: 1, kind: input, shape index: {}]
  %s2 = inlined_call_operand.hbm [shape: f32[2,1,128], index: 2, kind: output, shape index: {0}]
  %s3 = inlined_call_operand.hbm [shape: f32[2,24,256], index: 3, kind: output, shape index: {1}]
  %s4 = inlined_call_operand.hbm [shape: bf16[2,16,128], index: 4, kind: output, shape index: {2}]
  %s5 = inlined_call_operand.hbm [shape: f32[2,1,128], index: 5, kind: output, shape index: {3}]
  %6 = xla_tuple %s2, %s3, %s4, %s5
  %s7 = sld [smem:[#allocation0]]
  $region81: #{tpu_custom_call.1} parent=0
    _
  %s9 = ssub.s32 1, %s7
  %s10 = scalar_select 0, %s9, %s7
  $region1: #{tpu_custom_call.1} parent=0
    #allocation2 [shape = 'u8[8192]{0}', space=vmem, size = 0x2000, scoped, tag = 'input window, operand 0']
    #allocation3 [shape = 's32[2]{0}', space=sflag, size = 0x8, scoped, tag = 'scoped memory for tpu_custom_call.1']
    #allocation4 [shape = 's32[2]{0}', space=sflag, size = 0x8, scoped, tag = 'scoped memory for tpu_custom_call.1']
    #allocation5 [shape = 'u8[65536]{0}', space=vmem, size = 0x10000, scoped, tag = 'input window, operand 1, single buffered']
    #allocation6 [shape = 's32[1]{0}', space=sflag, size = 0x4, scoped, tag = 'scoped memory for tpu_custom_call.1']
    #allocation7 [shape = 'u8[1024]{0}', space=vmem, size = 0x400, scoped, tag = 'output window, operand 0']
    #allocation8 [shape = 'u8[49152]{0}', space=vmem, size = 0xc000, scoped, tag = 'output window, operand 1']
    #allocation9 [shape = 's32[2]{0}', space=sflag, size = 0x8, scoped, tag = 'scoped memory for tpu_custom_call.1']
    #allocation10 [shape = 'u8[8192]{0}', space=vmem, size = 0x2000, scoped, tag = 'output window, operand 2']
    #allocation11 [shape = 'u8[1024]{0}', space=vmem, size = 0x400, scoped, tag = 'output window, operand 3']
    #allocation12 [shape = 's32[2]{0}', space=sflag, size = 0x8, scoped, tag = 'scoped memory for tpu_custom_call.1']
    %11 = vsyncpa [#allocation3], 0
    %s12 = scalar_lea.sflag [#allocation3], 1
    %13 = vsyncpa %s12, 0
    %14 = vsyncpa [#allocation6], 0
    %15 = vsyncpa [#allocation4], 0
    %s16 = scalar_lea.sflag [#allocation4], 1
    %17 = vsyncpa %s16, 0
    %18 = vsyncpa [#allocation9], 0
    %s19 = scalar_lea.sflag [#allocation9], 1
    %20 = vsyncpa %s19, 0
    %21 = vsyncpa [#allocation12], 0
    %s22 = scalar_lea.sflag [#allocation12], 1
    %23 = vsyncpa %s22, 0
    loop: start=0, step=1, limit=6
    $region2: #{tpu_custom_call.1} parent=1 // loop_pre_header
      _
    $region3: #{tpu_custom_call.1} parent=1 // loop_header
      %s25 = sphi 0, %s29
      %p26 = scmp.ge.s32.totalorder %s25, 6
      %s32 = sphi 0, %s44
      %s33 = sphi 0, %s40
      %s34 = sphi 0, %s32
      %s35 = sphi 0, %s33
      %s36 = sphi 0, %s34
      %s37 = sphi 0, %s35
      %s49 = sphi 0, %s51
      %s52 = sphi 0, %s49
      %s53 = sphi 0, %s52
      %s69 = sphi 0, %s53
      %s73 = sphi 0, %s73
      %s75 = sphi 0, %s73
      %s76 = sphi 0, %s75
      %s90 = sphi 0, %s76
      %s96 = sphi 0, %s98
      %s99 = sphi 0, %s96
      %s100 = sphi 0, %s99
      %s116 = sphi 0, %s100
      %s122 = sphi 0, %s124
      %s125 = sphi 0, %s122
      %s126 = sphi 0, %s125
      %s142 = sphi 0, %s126
      %s148 = sphi 0, %s150
      %s151 = sphi 0, %s148
      %s152 = sphi 0, %s151
      %s168 = sphi 0, %s152
      %s174 = sphi 0, %s176
      %s177 = sphi 0, %s174
      %s178 = sphi 0, %s177
      %s194 = sphi 0, %s178
    $region4: #{tpu_custom_call.1} parent=1 // loop_header_branch
      %28 = sbr.rel (%p26) target = $region8
    $region5: #{tpu_custom_call.1} parent=1 // loop_body
      %s30 = ssub.s32 %s25, 1
      %s31 = ssub.s32 %s25, 2
      %s38 = sadd.s32 1, %s33
      %p39 = scmp.ge.s32.totalorder %s38, 2
      %s40 = scalar_select %p39, 0, %s38
      %s41 = sadd.s32 1, %s32
      %s42 = scalar_select %p39, %s41, %s32
      %p43 = scmp.ge.s32.totalorder %s42, 2
      %s44 = scalar_select %p43, 0, %s42
      %s45 = ssub.s32 %s32, %s44
      %s46 = ssub.s32 %s33, %s40
      %s47 = sor.u32 %s45, %s46
      %p48 = scmp.eq.s32.totalorder %s47, 0
      %s50 = sadd.s32 %s49, 1
      %s51 = scalar_select %p48, %s49, %s50
      %p54 = pneg %p48
      %p55 = scmp.eq.s32.totalorder %s25, 3
      %p56 = por %p54, %p55
      %p57 = scmp.ne.s32.totalorder %s49, %s52
      %p58 = scmp.eq.s32.totalorder %s25, 0
      %p59 = por %p57, %p58
      %p60 = scmp.ne.s32.totalorder %s49, %s52
      %p61 = scmp.eq.s32.totalorder %s30, 3
      %p62 = por %p60, %p61
      %p63 = scmp.ne.s32.totalorder %s52, %s53
      %p64 = scmp.eq.s32.totalorder %s30, 0
      %p65 = por %p63, %p64
      %p66 = scmp.ne.s32.totalorder %s52, %s53
      %p67 = scmp.eq.s32.totalorder %s31, 3
      %p68 = por %p66, %p67
      %p70 = scmp.ne.s32.totalorder %s53, %s69
      %p71 = scmp.eq.s32.totalorder %s31, 0
      %p72 = por %p70, %p71
      %s74 = sadd.s32 %s73, 1
      %p77 = scmp.eq.s32.totalorder %s25, 3
      %p78 = scmp.ne.s32.totalorder %s73, %s75
      %p79 = scmp.eq.s32.totalorder %s25, 0
      %p80 = por %p78, %p79
      %p81 = scmp.ne.s32.totalorder %s73, %s75
      %p82 = scmp.eq.s32.totalorder %s30, 3
      %p83 = por %p81, %p82
      %p84 = scmp.ne.s32.totalorder %s75, %s76
      %p85 = scmp.eq.s32.totalorder %s30, 0
      %p86 = por %p84, %p85
      %p87 = scmp.ne.s32.totalorder %s75, %s76
      %p88 = scmp.eq.s32.totalorder %s31, 3
      %p89 = por %p87, %p88
      %p91 = scmp.ne.s32.totalorder %s76, %s90
      %p92 = scmp.eq.s32.totalorder %s31, 0
      %p93 = por %p91, %p92
      %s94 = ssub.s32 %s32, %s44
      %p95 = scmp.eq.s32.totalorder %s94, 0
      %s97 = sadd.s32 %s96, 1
      %s98 = scalar_select %p95, %s96, %s97
      %p101 = pneg %p95
      %p102 = scmp.eq.s32.totalorder %s25, 3
      %p103 = por %p101, %p102
      %p104 = scmp.ne.s32.totalorder %s96, %s99
      %p105 = scmp.eq.s32.totalorder %s25, 0
      %p106 = por %p104, %p105
      %p107 = scmp.ne.s32.totalorder %s96, %s99
      %p108 = scmp.eq.s32.totalorder %s30, 3
      %p109 = por %p107, %p108
      %p110 = scmp.ne.s32.totalorder %s99, %s100
      %p111 = scmp.eq.s32.totalorder %s30, 0
      %p112 = por %p110, %p111
      %p113 = scmp.ne.s32.totalorder %s99, %s100
      %p114 = scmp.eq.s32.totalorder %s31, 3
      %p115 = por %p113, %p114
      %p117 = scmp.ne.s32.totalorder %s100, %s116
      %p118 = scmp.eq.s32.totalorder %s31, 0
      %p119 = por %p117, %p118
      %s120 = ssub.s32 %s32, %s44
      %p121 = scmp.eq.s32.totalorder %s120, 0
      %s123 = sadd.s32 %s122, 1
      %s124 = scalar_select %p121, %s122, %s123
      %p127 = pneg %p121
      %p128 = scmp.eq.s32.totalorder %s25, 3
      %p129 = por %p127, %p128
      %p130 = scmp.ne.s32.totalorder %s122, %s125
      %p131 = scmp.eq.s32.totalorder %s25, 0
      %p132 = por %p130, %p131
      %p133 = scmp.ne.s32.totalorder %s122, %s125
      %p134 = scmp.eq.s32.totalorder %s30, 3
      %p135 = por %p133, %p134
      %p136 = scmp.ne.s32.totalorder %s125, %s126
      %p137 = scmp.eq.s32.totalorder %s30, 0
      %p138 = por %p136, %p137
      %p139 = scmp.ne.s32.totalorder %s125, %s126
      %p140 = scmp.eq.s32.totalorder %s31, 3
      %p141 = por %p139, %p140
      %p143 = scmp.ne.s32.totalorder %s126, %s142
      %p144 = scmp.eq.s32.totalorder %s31, 0
      %p145 = por %p143, %p144
      %s146 = ssub.s32 %s32, %s44
      %p147 = scmp.eq.s32.totalorder %s146, 0
      %s149 = sadd.s32 %s148, 1
      %s150 = scalar_select %p147, %s148, %s149
      %p153 = pneg %p147
      %p154 = scmp.eq.s32.totalorder %s25, 3
      %p155 = por %p153, %p154
      %p156 = scmp.ne.s32.totalorder %s148, %s151
      %p157 = scmp.eq.s32.totalorder %s25, 0
      %p158 = por %p156, %p157
      %p159 = scmp.ne.s32.totalorder %s148, %s151
      %p160 = scmp.eq.s32.totalorder %s30, 3
      %p161 = por %p159, %p160
      %p162 = scmp.ne.s32.totalorder %s151, %s152
      %p163 = scmp.eq.s32.totalorder %s30, 0
      %p164 = por %p162, %p163
      %p165 = scmp.ne.s32.totalorder %s151, %s152
      %p166 = scmp.eq.s32.totalorder %s31, 3
      %p167 = por %p165, %p166
      %p169 = scmp.ne.s32.totalorder %s152, %s168
      %p170 = scmp.eq.s32.totalorder %s31, 0
      %p171 = por %p169, %p170
      %s172 = ssub.s32 %s32, %s44
      %p173 = scmp.eq.s32.totalorder %s172, 0
      %s175 = sadd.s32 %s174, 1
      %s176 = scalar_select %p173, %s174, %s175
      %p179 = pneg %p173
      %p180 = scmp.eq.s32.totalorder %s25, 3
      %p181 = por %p179, %p180
      %p182 = scmp.ne.s32.totalorder %s174, %s177
      %p183 = scmp.eq.s32.totalorder %s25, 0
      %p184 = por %p182, %p183
      %p185 = scmp.ne.s32.totalorder %s174, %s177
      %p186 = scmp.eq.s32.totalorder %s30, 3
      %p187 = por %p185, %p186
      %p188 = scmp.ne.s32.totalorder %s177, %s178
      %p189 = scmp.eq.s32.totalorder %s30, 0
      %p190 = por %p188, %p189
      %p191 = scmp.ne.s32.totalorder %s177, %s178
      %p192 = scmp.eq.s32.totalorder %s31, 3
      %p193 = por %p191, %p192
      %p195 = scmp.ne.s32.totalorder %s178, %s194
      %p196 = scmp.eq.s32.totalorder %s31, 0
      %p197 = por %p195, %p196
      %p198 = scmp.le.s32.totalorder 1, %s25
      %p199 = scmp.lt.s32.totalorder %s25, 5
      %p200 = pnand %p198, %p199
      %p201 = pneg %p200
      // Predicated region
      $region9: #{tpu_custom_call.1} parent=5 // pred_check
        _
      $region10: #{tpu_custom_call.1} parent=5 // pred_check_branch
        %203 = sbr.rel (%p200) target = $region12
      $region11: #{tpu_custom_call.1} parent=5 // pred_region
        %s204 = ssub.s32 %s25, 1
        // Predicated region
        $region13: #{tpu_custom_call.1} parent=11 // pred_check
          %p205 = pneg %p86
        $region14: #{tpu_custom_call.1} parent=11 // pred_check_branch
          %207 = sbr.rel (%p205) target = $region16
        $region15: #{tpu_custom_call.1} parent=11 // pred_region
          %s209 = ssub.s32 2048, 2048
          %210 = vsyncadd [#allocation6], %s209
          %s211 = sshll.u32 [#allocation5], 4
          %s212 = int_to_ptr.vmem [resolvable:$true] %s211
          %217 = dma.hbm_to_vmem [thread:$0]  %s1, 2048, %s212, [#allocation6], 64, 64, 4
        $region16: #{tpu_custom_call.1} parent=11 // pred_fallthru
          _
      $region12: #{tpu_custom_call.1} parent=5 // pred_fallthru
        _
      %p218 = scmp.lt.s32.totalorder %s25, 4
      // Predicated region
      $region17: #{tpu_custom_call.1} parent=5 // pred_check
        %p219 = pneg %p218
      $region18: #{tpu_custom_call.1} parent=5 // pred_check_branch
        %221 = sbr.rel (%p219) target = $region20
      $region19: #{tpu_custom_call.1} parent=5 // pred_region
        // Predicated region
        $region21: #{tpu_custom_call.1} parent=19 // pred_check
          %p222 = pneg %p59
        $region22: #{tpu_custom_call.1} parent=19 // pred_check_branch
          %224 = sbr.rel (%p222) target = $region24
        $region23: #{tpu_custom_call.1} parent=19 // pred_region
          %s225 = sand.u32 %s49, 1
          %s226 = scalar_lea.sflag [#allocation3], %s225
          %s227 = sand.u32 %s49, 1
          %s228 = smul.addr %s227, 8
          %s229 = scalar_lea.vmem [#allocation2], %s228
          %s231 = ssub.s32 128, 128
          %232 = vsyncadd %s226, %s231
          %s233 = smul.addr %s33, 2
          %s234 = smul.addr %s32, 4
          %s235 = sadd.s32 %s233, %s234
          %s236 = smul.addr %s235, 64
          %s237 = scalar_lea.hbm %s0, %s236
          %s239 = sshll.u32 %s229, 4
          %s240 = int_to_ptr.vmem [resolvable:$true] %s239
          %242 = dma.hbm_to_vmem [thread:$0]  %s237, 128, %s240, %s226
        $region24: #{tpu_custom_call.1} parent=19 // pred_fallthru
          _
      $region20: #{tpu_custom_call.1} parent=5 // pred_fallthru
        _
      %p243 = scmp.le.s32.totalorder 1, %s25
      %p244 = scmp.lt.s32.totalorder %s25, 5
      %p245 = pnand %p243, %p244
      %p246 = pneg %p245
      // Predicated region
      $region25: #{tpu_custom_call.1} parent=5 // pred_check
        _
      $region26: #{tpu_custom_call.1} parent=5 // pred_check_branch
        %248 = sbr.rel (%p245) target = $region28
      $region27: #{tpu_custom_call.1} parent=5 // pred_region
        %s249 = ssub.s32 %s25, 1
        %s250 = sand.u32 %s52, 1
        %s251 = scalar_lea.sflag [#allocation3], %s250
        %s252 = sand.u32 %s52, 1
        %s253 = smul.addr %s252, 8
        %s254 = scalar_lea.vmem [#allocation2], %s253
        // Predicated region
        $region29: #{tpu_custom_call.1} parent=27 // pred_check
          %p255 = pneg %p65
        $region30: #{tpu_custom_call.1} parent=27 // pred_check_branch
          %257 = sbr.rel (%p255) target = $region32
        $region31: #{tpu_custom_call.1} parent=27 // pred_region
          %258 = dma.done %s251, 128
        $region32: #{tpu_custom_call.1} parent=27 // pred_fallthru
          _
        // Predicated region
        $region33: #{tpu_custom_call.1} parent=27 // pred_check
          %p259 = pneg %p86
        $region34: #{tpu_custom_call.1} parent=27 // pred_check_branch
          %261 = sbr.rel (%p259) target = $region36
        $region35: #{tpu_custom_call.1} parent=27 // pred_region
          %262 = dma.done [#allocation6], 2048
        $region36: #{tpu_custom_call.1} parent=27 // pred_fallthru
          _
        %s263 = sand.u32 %s52, 1
        %s264 = scalar_lea.sflag [#allocation3], %s263
        %s265 = sand.u32 %s52, 1
        %s266 = smul.addr %s265, 8
        %s267 = scalar_lea.vmem [#allocation2], %s266
        %p268 = pneg %p65
        %p269 = pneg %p62
        %p270 = pneg %p86
        %p271 = pneg %p83
        %p272 = pneg %p112
        %p273 = pneg %p109
        %s274 = sand.u32 %s99, 1
        %s275 = scalar_lea.sflag [#allocation4], %s274
        %s276 = sand.u32 %s99, 1
        %s277 = scalar_lea.vmem [#allocation7], %s276
        %p278 = pneg %p138
        %p279 = pneg %p135
        %s280 = sand.u32 %s30, 1
        %s281 = scalar_lea.sflag [#allocation9], %s280
        %s282 = sand.u32 %s125, 1
        %s283 = smul.addr %s282, 48
        %s284 = scalar_lea.vmem [#allocation8], %s283
        %p285 = pneg %p164
        %p286 = pneg %p161
        %s287 = sand.u32 %s30, 1
        %s288 = scalar_lea.sflag [#allocation9], %s287
        %s289 = sand.u32 %s151, 1
        %s290 = smul.addr %s289, 8
        %s291 = scalar_lea.vmem [#allocation10], %s290
        %p292 = pneg %p190
        %p293 = pneg %p187
        %s294 = sand.u32 %s177, 1
        %s295 = scalar_lea.sflag [#allocation12], %s294
        %s296 = sand.u32 %s177, 1
        %s297 = scalar_lea.vmem [#allocation11], %s296
        %p299 = scmp.eq.s32.totalorder %s35, 0
        // Predicated region
        $region37: #{tpu_custom_call.1} parent=27 // pred_check
          %p300 = pneg %p299
        $region38: #{tpu_custom_call.1} parent=27 // pred_check_branch
          %302 = sbr.rel (%p300) target = $region40
        $region39: #{tpu_custom_call.1} parent=27 // pred_region
          %303 = vst [vmem:[%s277] sm:$0x1] 0.0
          %304 = vst [vmem:[%s284] sm:$0xff] 0.0
          %305 = vst [vmem:[%s284 + $0x8] sm:$0xff] 0.0
          %306 = vst [vmem:[%s284 + $0x10] sm:$0xff] 0.0
          %307 = vst [vmem:[%s284 + $0x18] sm:$0xff] 0.0
          %308 = vst [vmem:[%s284 + $0x20] sm:$0xff] 0.0
          %309 = vst [vmem:[%s284 + $0x28] sm:$0xff] 0.0
          %310 = vst [vmem:[%s297] sm:$0x1] 0.0
        $region40: #{tpu_custom_call.1} parent=27 // pred_fallthru
          _
        %v311 = vld [vmem:[%s254] sm:$0xff]
        %v312 = vld [vmem:[#allocation5] sm:$0xf]
        %v313 = vld [vmem:[#allocation5 + $0x4] sm:$0xf]
        %v314 = vld [vmem:[#allocation5 + $0x8] sm:$0xf]
        %v315 = vld [vmem:[#allocation5 + $0xc] sm:$0xf]
        %v316 = vld [vmem:[#allocation5 + $0x10] sm:$0xf]
        %v317 = vld [vmem:[#allocation5 + $0x14] sm:$0xf]
        %v318 = vld [vmem:[#allocation5 + $0x18] sm:$0xf]
        %v319 = vld [vmem:[#allocation5 + $0x1c] sm:$0xf]
        %v320 = vld [vmem:[#allocation5 + $0x20] sm:$0xf]
        %v321 = vld [vmem:[#allocation5 + $0x24] sm:$0xf]
        %v322 = vld [vmem:[#allocation5 + $0x28] sm:$0xf]
        %v323 = vld [vmem:[#allocation5 + $0x2c] sm:$0xf]
        %v324 = vld [vmem:[#allocation5 + $0x30] sm:$0xf]
        %v325 = vld [vmem:[#allocation5 + $0x34] sm:$0xf]
        %v326 = vld [vmem:[#allocation5 + $0x38] sm:$0xf]
        %v327 = vld [vmem:[#allocation5 + $0x3c] sm:$0xf]
        %v328 = vld [vmem:[#allocation5 + $0x40] sm:$0xf]
        %v329 = vld [vmem:[#allocation5 + $0x44] sm:$0xf]
        %v330 = vld [vmem:[#allocation5 + $0x48] sm:$0xf]
        %v331 = vld [vmem:[#allocation5 + $0x4c] sm:$0xf]
        %v332 = vld [vmem:[#allocation5 + $0x50] sm:$0xf]
        %v333 = vld [vmem:[#allocation5 + $0x54] sm:$0xf]
        %v334 = vld [vmem:[#allocation5 + $0x58] sm:$0xf]
        %v335 = vld [vmem:[#allocation5 + $0x5c] sm:$0xf]
        %v336 = vld [vmem:[#allocation5 + $0x60] sm:$0xf]
        %v337 = vld [vmem:[#allocation5 + $0x64] sm:$0xf]
        %v338 = vld [vmem:[#allocation5 + $0x68] sm:$0xf]
        %v339 = vld [vmem:[#allocation5 + $0x6c] sm:$0xf]
        %v340 = vld [vmem:[#allocation5 + $0x70] sm:$0xf]
        %v341 = vld [vmem:[#allocation5 + $0x74] sm:$0xf]
        %v342 = vld [vmem:[#allocation5 + $0x78] sm:$0xf]
        %v343 = vld [vmem:[#allocation5 + $0x7c] sm:$0xf]
        %v345 = vunpack.c.l.b16 %v311
        %v346 = vunpack.c.h.b16 %v311
        %v347 = vpack.c.b16 %v345, %v345
        %v348 = vpack.c.b16 %v346, %v346
        %v383 = vunpack.c.l.b16 %v312
        %v384 = vunpack.c.l.b16 %v313
        %v385 = vunpack.c.l.b16 %v314
        %v386 = vunpack.c.l.b16 %v315
        %v387 = vunpack.c.l.b16 %v316
        %v388 = vunpack.c.l.b16 %v317
        %v389 = vunpack.c.l.b16 %v318
        %v390 = vunpack.c.l.b16 %v319
        %v391 = vunpack.c.l.b16 %v320
        %v392 = vunpack.c.l.b16 %v321
        %v393 = vunpack.c.l.b16 %v322
        %v394 = vunpack.c.l.b16 %v323
        %v395 = vunpack.c.l.b16 %v324
        %v396 = vunpack.c.l.b16 %v325
        %v397 = vunpack.c.l.b16 %v326
        %v398 = vunpack.c.l.b16 %v327
        %v399 = vunpack.c.l.b16 %v328
        %v400 = vunpack.c.l.b16 %v329
        %v401 = vunpack.c.l.b16 %v330
        %v402 = vunpack.c.l.b16 %v331
        %v403 = vunpack.c.l.b16 %v332
        %v404 = vunpack.c.l.b16 %v333
        %v405 = vunpack.c.l.b16 %v334
        %v406 = vunpack.c.l.b16 %v335
        %v407 = vunpack.c.l.b16 %v336
        %v408 = vunpack.c.l.b16 %v337
        %v409 = vunpack.c.l.b16 %v338
        %v410 = vunpack.c.l.b16 %v339
        %v411 = vunpack.c.l.b16 %v340
        %v412 = vunpack.c.l.b16 %v341
        %v413 = vunpack.c.l.b16 %v342
        %v414 = vunpack.c.l.b16 %v343
        %v415 = vpack.c.b16 %v384, %v383
        %v416 = vpack.c.b16 %v386, %v385
        %v417 = vpack.c.b16 %v388, %v387
        %v418 = vpack.c.b16 %v390, %v389
        %v419 = vpack.c.b16 %v392, %v391
        %v420 = vpack.c.b16 %v394, %v393
        %v421 = vpack.c.b16 %v396, %v395
        %v422 = vpack.c.b16 %v398, %v397
        %v423 = vpack.c.b16 %v400, %v399
        %v424 = vpack.c.b16 %v402, %v401
        %v425 = vpack.c.b16 %v404, %v403
        %v426 = vpack.c.b16 %v406, %v405
        %v427 = vpack.c.b16 %v408, %v407
        %v428 = vpack.c.b16 %v410, %v409
        %v429 = vpack.c.b16 %v412, %v411
        %v430 = vpack.c.b16 %v414, %v413
        %447 = vmatprep.subr.bf16.mxu0 0
        %448 = vmatpush1.bf16.msra.mxu0 %v422
        %449 = vmatprep.subr.bf16.mxu0 0
        %450 = vmatpush1.bf16.msra.mxu0 %v421
        %451 = vmatprep.subr.bf16.mxu0 0
        %452 = vmatpush1.bf16.msra.mxu0 %v420
        %453 = vmatprep.subr.bf16.mxu0 0
        %454 = vmatpush1.bf16.msra.mxu0 %v419
        %455 = vmatprep.subr.bf16.mxu0 0
        %456 = vmatpush1.bf16.msra.mxu0 %v418
        %457 = vmatprep.subr.bf16.mxu0 0
        %458 = vmatpush1.bf16.msra.mxu0 %v417
        %459 = vmatprep.subr.bf16.mxu0 0
        %460 = vmatpush1.bf16.msra.mxu0 %v416
        %461 = vmatprep.subr.bf16.mxu0 0
        %462 = vmatpush1.bf16.msra.mxu0 %v415
        %463 = vmatprep.subr.bf16.mxu0 0
        %464 = vmatpush2.bf16.msra.mxu0 %v430
        %465 = vmatprep.subr.bf16.mxu0 0
        %466 = vmatpush2.bf16.msra.mxu0 %v429
        %467 = vmatprep.subr.bf16.mxu0 0
        %468 = vmatpush2.bf16.msra.mxu0 %v428
        %469 = vmatprep.subr.bf16.mxu0 0
        %470 = vmatpush2.bf16.msra.mxu0 %v427
        %471 = vmatprep.subr.bf16.mxu0 0
        %472 = vmatpush2.bf16.msra.mxu0 %v426
        %473 = vmatprep.subr.bf16.mxu0 0
        %474 = vmatpush2.bf16.msra.mxu0 %v425
        %475 = vmatprep.subr.bf16.mxu0 0
        %476 = vmatpush2.bf16.msra.mxu0 %v424
        %477 = vmatprep.subr.bf16.mxu0 0
        %478 = vmatpush2.bf16.msra.mxu0 %v423
        %479 = vmatprep.mubr.bf16.mxu0 %v348
        %480 = vmatmul.mubr.bf16.gmra.mxu0 %v347
        %v481 = vpop.f32.mrf.mxu0
        %v482 = vadd.f32 0.0, %v481
        %v483 = vpop.f32.mrf.mxu0
        %v484 = vpop.f32.mrf.mxu0
        %v485 = vpop.f32.mrf.mxu0
        %486 = vdwg.mxu0
        %v487 = vmax.f32 %v482, 0.0
        %v488 = vld [vmem:[%s277] sm:$0x1]
        %v489 = vrot.slane %v482, 4
        %v490 = vadd.f32 %v482, %v489
        %v491 = vrot.slane %v490, 2
        %v492 = vadd.f32 %v490, %v491
        %v493 = vrot.slane %v492, 1
        %v494 = vadd.f32 %v492, %v493
        %v495 = vadd.f32 %v488, %v494
        %496 = vst [vmem:[%s277] sm:$0x1] %v495
        %v497 = vld [vmem:[%s297] sm:$0x1]
        %v498 = vrot.slane %v487, 4
        %v499 = vmax.f32 %v487, %v498
        %v500 = vrot.slane %v499, 2
        %v501 = vmax.f32 %v499, %v500
        %v502 = vrot.slane %v501, 1
        %v503 = vmax.f32 %v501, %v502
        %v504 = vmax.f32 %v497, %v503
        %505 = vst [vmem:[%s297] sm:$0x1] %v504
        %s506 = smul.u32 %s35, 8
        %v507 = vpack.c.bf16 %v487, %v487
        %s508 = sshra.s32 %s506, 3
        %s509 = sand.u32 %s506, 7
        %s510 = smul.addr %s508, 4
        %s511 = scalar_lea.vmem %s291, %s510 [#allocation10]
        %512 = vst [vmem:[%s511] sm:$0xf] %v507
        %513 = vxpose.xlu0.c.b16.start [1/8] %v507, 128
        %514 = vxpose.xlu0.c.b16.cont [2/8] 0, 128
        %515 = vxpose.xlu0.c.b16.cont [3/8] 0, 128
        %516 = vxpose.xlu0.c.b16.cont [4/8] 0, 128
        %517 = vxpose.xlu0.c.b16.cont [5/8] 0, 128
        %518 = vxpose.xlu0.c.b16.cont [6/8] 0, 128
        %519 = vxpose.xlu0.c.b16.cont [7/8] 0, 128
        %520 = vxpose.xlu0.c.b16.end [8/8] 0, 128
        %v521 = vpop.trf.xlu0
        %v522 = vpop.trf.xlu0
        %v523 = vpop.trf.xlu0
        %v524 = vpop.trf.xlu0
        %v525 = vpop.trf.xlu0
        %v526 = vpop.trf.xlu0
        %v527 = vpop.trf.xlu0
        %v528 = vpop.trf.xlu0
        %vm529 = vcmask 64512
        %v531 = vsel %vm529, %v521, 0
        %v534 = vsel %vm529, %v522, 0
        %v537 = vsel %vm529, %v523, 0
        %v540 = vsel %vm529, %v524, 0
        %v543 = vsel %vm529, %v525, 0
        %v546 = vsel %vm529, %v526, 0
        %v549 = vsel %vm529, %v527, 0
        %v552 = vsel %vm529, %v528, 0
        %vm554 = vcmask 1043456
        %v556 = vsel %vm554, %v347, 0
        %v559 = vsel %vm554, %v348, 0
        %561 = vmatprep.subr.bf16.mxu0 0
        %562 = vmatpush1.bf16.msra.mxu0 0
        %563 = vmatprep.subr.bf16.mxu0 0
        %564 = vmatpush1.bf16.msra.mxu0 0
        %565 = vmatprep.subr.bf16.mxu0 0
        %566 = vmatpush1.bf16.msra.mxu0 0
        %567 = vmatprep.subr.bf16.mxu0 0
        %568 = vmatpush1.bf16.msra.mxu0 0
        %569 = vmatprep.subr.bf16.mxu0 0
        %570 = vmatpush1.bf16.msra.mxu0 0
        %571 = vmatprep.subr.bf16.mxu0 0
        %572 = vmatpush1.bf16.msra.mxu0 0
        %573 = vmatprep.subr.bf16.mxu0 0
        %574 = vmatpush1.bf16.msra.mxu0 0
        %575 = vmatprep.subr.bf16.mxu0 %v559
        %576 = vmatpush1.bf16.msra.mxu0 %v556
        %577 = vmatprep.subr.bf16.mxu0 0
        %578 = vmatpush2.bf16.msra.mxu0 0
        %579 = vmatprep.subr.bf16.mxu0 0
        %580 = vmatpush2.bf16.msra.mxu0 0
        %581 = vmatprep.subr.bf16.mxu0 0
        %582 = vmatpush2.bf16.msra.mxu0 0
        %583 = vmatprep.subr.bf16.mxu0 0
        %584 = vmatpush2.bf16.msra.mxu0 0
        %585 = vmatprep.subr.bf16.mxu0 0
        %586 = vmatpush2.bf16.msra.mxu0 0
        %587 = vmatprep.subr.bf16.mxu0 0
        %588 = vmatpush2.bf16.msra.mxu0 0
        %589 = vmatprep.subr.bf16.mxu0 0
        %590 = vmatpush2.bf16.msra.mxu0 0
        %591 = vmatprep.subr.bf16.mxu0 0
        %592 = vmatpush2.bf16.msra.mxu0 0
        %593 = vmatprep.mubr.bf16.mxu0 0
        %594 = vmatmul.mubr.bf16.gmra.mxu0 %v531
        %v595 = vpop.f32.mrf.mxu0
        %v596 = vadd.f32 0.0, %v595
        %v597 = vpop.f32.mrf.mxu0
        %v598 = vadd.f32 0.0, %v597
        %v599 = vpop.f32.mrf.mxu0
        %v600 = vadd.f32 0.0, %v599
        %v601 = vpop.f32.mrf.mxu0
        %v602 = vadd.f32 0.0, %v601
        %603 = vmatprep.mubr.bf16.mxu0 0
        %604 = vmatmul.mubr.bf16.gmra.mxu0 %v534
        %v605 = vpop.f32.mrf.mxu0
        %v606 = vadd.f32 0.0, %v605
        %v607 = vpop.f32.mrf.mxu0
        %v608 = vadd.f32 0.0, %v607
        %v609 = vpop.f32.mrf.mxu0
        %v610 = vpop.f32.mrf.mxu0
        %611 = vmatprep.mubr.bf16.mxu0 0
        %612 = vmatmul.mubr.bf16.gmra.mxu0 %v537
        %v613 = vpop.f32.mrf.mxu0
        %v614 = vpop.f32.mrf.mxu0
        %v615 = vpop.f32.mrf.mxu0
        %v616 = vpop.f32.mrf.mxu0
        %617 = vmatprep.mubr.bf16.mxu0 0
        %618 = vmatmul.mubr.bf16.gmra.mxu0 %v540
        %v619 = vpop.f32.mrf.mxu0
        %v620 = vpop.f32.mrf.mxu0
        %v621 = vpop.f32.mrf.mxu0
        %v622 = vpop.f32.mrf.mxu0
        %623 = vmatprep.mubr.bf16.mxu0 0
        %624 = vmatmul.mubr.bf16.gmra.mxu0 %v543
        %v625 = vpop.f32.mrf.mxu0
        %v626 = vpop.f32.mrf.mxu0
        %v627 = vpop.f32.mrf.mxu0
        %v628 = vpop.f32.mrf.mxu0
        %629 = vmatprep.mubr.bf16.mxu0 0
        %630 = vmatmul.mubr.bf16.gmra.mxu0 %v546
        %v631 = vpop.f32.mrf.mxu0
        %v632 = vpop.f32.mrf.mxu0
        %v633 = vpop.f32.mrf.mxu0
        %v634 = vpop.f32.mrf.mxu0
        %635 = vmatprep.mubr.bf16.mxu0 0
        %636 = vmatmul.mubr.bf16.gmra.mxu0 %v549
        %v637 = vpop.f32.mrf.mxu0
        %v638 = vpop.f32.mrf.mxu0
        %v639 = vpop.f32.mrf.mxu0
        %v640 = vpop.f32.mrf.mxu0
        %641 = vmatprep.mubr.bf16.mxu0 0
        %642 = vmatmul.mubr.bf16.gmra.mxu0 %v552
        %v643 = vpop.f32.mrf.mxu0
        %v644 = vpop.f32.mrf.mxu0
        %v645 = vpop.f32.mrf.mxu0
        %v646 = vpop.f32.mrf.mxu0
        %647 = vdwg.mxu0
        %v648 = vld [vmem:[%s284] sm:$0xff]
        %v649 = vld [vmem:[%s284 + $0x8] sm:$0xff]
        %v650 = vld [vmem:[%s284 + $0x10] sm:$0xff]
        %v651 = vld [vmem:[%s284 + $0x18] sm:$0xff]
        %v652 = vld [vmem:[%s284 + $0x20] sm:$0xff]
        %v653 = vld [vmem:[%s284 + $0x28] sm:$0xff]
        %v654 = vadd.f32 %v648, %v596
        %v655 = vadd.f32 %v649, %v598
        %v656 = vadd.f32 %v650, %v600
        %v657 = vadd.f32 %v651, %v602
        %v658 = vadd.f32 %v652, %v606
        %v659 = vadd.f32 %v653, %v608
        %660 = vst [vmem:[%s284] sm:$0xff] %v654
        %661 = vst [vmem:[%s284 + $0x8] sm:$0xff] %v655
        %662 = vst [vmem:[%s284 + $0x10] sm:$0xff] %v656
        %663 = vst [vmem:[%s284 + $0x18] sm:$0xff] %v657
        %664 = vst [vmem:[%s284 + $0x20] sm:$0xff] %v658
        %665 = vst [vmem:[%s284 + $0x28] sm:$0xff] %v659
        %p666 = scmp.eq.s32.totalorder %s35, 1
        // Predicated region
        $region41: #{tpu_custom_call.1} parent=27 // pred_check
          %p667 = pneg %p666
        $region42: #{tpu_custom_call.1} parent=27 // pred_check_branch
          %669 = sbr.rel (%p667) target = $region44
        $region43: #{tpu_custom_call.1} parent=27 // pred_region
          %v670 = vld [vmem:[%s277] sm:$0x1]
          %v671 = vmul.f32 %v670, 0.0625
          %672 = vst [vmem:[%s277] sm:$0x1] %v671
          %v673 = vld [vmem:[%s297] sm:$0x1]
          %v674 = vadd.f32 %v673, 1e-05
          %v675 = vrcp.pop %v674
          %v676 = vld [vmem:[%s291] sm:$0xf]
          %v677 = vld [vmem:[%s291 + $0x4] sm:$0xf]
          %v678 = vunpack.c.l.bf16 %v676
          %v679 = vunpack.c.l.bf16 %v677
          %v681 = vlaneseq
          %v682 = vshrl.u32 %v681, 7
          %v683 = vsub.s32 0, %v682
          %v684 = vrot.slane %v675, %v683
          %v686 = vmul.f32 %v678, %v684
          %v687 = vmul.f32 %v679, %v684
          %v688 = vpack.c.bf16 %v687, %v686
          %v690 = vunpack.c.l.b16 %v688
          %v691 = vunpack.c.h.b16 %v688
          %v692 = vpack.c.b16 %v690, %v690
          %v693 = vpack.c.b16 %v691, %v691
          %696 = vst [vmem:[%s291] sm:$0xf] %v692
          %697 = vst [vmem:[%s291 + $0x4] sm:$0xf] %v693
        $region44: #{tpu_custom_call.1} parent=27 // pred_fallthru
          _
        %s698 = sand.u32 %s99, 1
        %s699 = scalar_lea.sflag [#allocation4], %s698
        %s700 = sand.u32 %s99, 1
        %s701 = scalar_lea.vmem [#allocation7], %s700
        %s702 = sand.u32 %s30, 1
        %s703 = scalar_lea.sflag [#allocation9], %s702
        %s704 = sand.u32 %s125, 1
        %s705 = smul.addr %s704, 48
        %s706 = scalar_lea.vmem [#allocation8], %s705
        %s707 = sand.u32 %s30, 1
        %s708 = scalar_lea.sflag [#allocation9], %s707
        %s709 = sand.u32 %s151, 1
        %s710 = smul.addr %s709, 8
        %s711 = scalar_lea.vmem [#allocation10], %s710
        %s712 = sand.u32 %s177, 1
        %s713 = scalar_lea.sflag [#allocation12], %s712
        %s714 = sand.u32 %s177, 1
        %s715 = scalar_lea.vmem [#allocation11], %s714
        // Predicated region
        $region45: #{tpu_custom_call.1} parent=27 // pred_check
          %p716 = pneg %p109
        $region46: #{tpu_custom_call.1} parent=27 // pred_check_branch
          %718 = sbr.rel (%p716) target = $region48
        $region47: #{tpu_custom_call.1} parent=27 // pred_region
          %s720 = ssub.s32 16, 16
          %721 = vsyncadd %s699, %s720
          %s722 = smul.addr %s34, 16
          %s723 = scalar_lea.hbm %s2, %s722
          %s725 = sshll.u32 %s701, 4
          %s726 = int_to_ptr.vmem [resolvable:$true] %s725
          %728 = dma.vmem_to_hbm [thread:$0]  %s726, 16, %s723, %s699
        $region48: #{tpu_custom_call.1} parent=27 // pred_fallthru
          _
        // Predicated region
        $region49: #{tpu_custom_call.1} parent=27 // pred_check
          %p729 = pneg %p135
        $region50: #{tpu_custom_call.1} parent=27 // pred_check_branch
          %731 = sbr.rel (%p729) target = $region52
        $region51: #{tpu_custom_call.1} parent=27 // pred_region
          %s733 = ssub.s32 768, 768
          %734 = vsyncadd %s703, %s733
          %s735 = smul.addr %s34, 6
          %s736 = smul.addr %s735, 128
          %s737 = scalar_lea.hbm %s3, %s736
          %s738 = sshll.u32 %s706, 4
          %s739 = int_to_ptr.vmem [resolvable:$true] %s738
          %744 = dma.vmem_to_hbm [thread:$0]  %s739, 768, %s737, %s703, 256, 256, 16
        $region52: #{tpu_custom_call.1} parent=27 // pred_fallthru
          _
        // Predicated region
        $region53: #{tpu_custom_call.1} parent=27 // pred_check
          %p745 = pneg %p161
        $region54: #{tpu_custom_call.1} parent=27 // pred_check_branch
          %747 = sbr.rel (%p745) target = $region56
        $region55: #{tpu_custom_call.1} parent=27 // pred_region
          %s749 = ssub.s32 128, 128
          %750 = vsyncadd %s708, %s749
          %s751 = smul.addr %s34, 2
          %s752 = smul.addr %s751, 64
          %s753 = scalar_lea.hbm %s4, %s752
          %s754 = sshll.u32 %s711, 4
          %s755 = int_to_ptr.vmem [resolvable:$true] %s754
          %760 = dma.vmem_to_hbm [thread:$0]  %s755, 128, %s753, %s708, 64, 64, 4
        $region56: #{tpu_custom_call.1} parent=27 // pred_fallthru
          _
        // Predicated region
        $region57: #{tpu_custom_call.1} parent=27 // pred_check
          %p761 = pneg %p187
        $region58: #{tpu_custom_call.1} parent=27 // pred_check_branch
          %763 = sbr.rel (%p761) target = $region60
        $region59: #{tpu_custom_call.1} parent=27 // pred_region
          %s765 = ssub.s32 16, 16
          %766 = vsyncadd %s713, %s765
          %s767 = smul.addr %s34, 16
          %s768 = scalar_lea.hbm %s5, %s767
          %s770 = sshll.u32 %s715, 4
          %s771 = int_to_ptr.vmem [resolvable:$true] %s770
          %773 = dma.vmem_to_hbm [thread:$0]  %s771, 16, %s768, %s713
        $region60: #{tpu_custom_call.1} parent=27 // pred_fallthru
          _
      $region28: #{tpu_custom_call.1} parent=5 // pred_fallthru
        _
      %p774 = scmp.le.s32.totalorder 2, %s25
      // Predicated region
      $region61: #{tpu_custom_call.1} parent=5 // pred_check
        %p775 = pneg %p774
      $region62: #{tpu_custom_call.1} parent=5 // pred_check_branch
        %777 = sbr.rel (%p775) target = $region64
      $region63: #{tpu_custom_call.1} parent=5 // pred_region
        %s778 = ssub.s32 %s25, 2
        // Predicated region
        $region65: #{tpu_custom_call.1} parent=63 // pred_check
          %p779 = pneg %p115
        $region66: #{tpu_custom_call.1} parent=63 // pred_check_branch
          %781 = sbr.rel (%p779) target = $region68
        $region67: #{tpu_custom_call.1} parent=63 // pred_region
          %s782 = sand.u32 %s100, 1
          %s783 = scalar_lea.sflag [#allocation4], %s782
          %s784 = sand.u32 %s100, 1
          %s785 = scalar_lea.vmem [#allocation7], %s784
          %786 = dma.done %s783, 16
        $region68: #{tpu_custom_call.1} parent=63 // pred_fallthru
          _
        // Predicated region
        $region69: #{tpu_custom_call.1} parent=63 // pred_check
          %p787 = pneg %p141
        $region70: #{tpu_custom_call.1} parent=63 // pred_check_branch
          %789 = sbr.rel (%p787) target = $region72
        $region71: #{tpu_custom_call.1} parent=63 // pred_region
          %s790 = sand.u32 %s31, 1
          %s791 = scalar_lea.sflag [#allocation9], %s790
          %s792 = sand.u32 %s126, 1
          %s793 = smul.addr %s792, 48
          %s794 = scalar_lea.vmem [#allocation8], %s793
          %795 = dma.done %s791, 768
        $region72: #{tpu_custom_call.1} parent=63 // pred_fallthru
          _
        // Predicated region
        $region73: #{tpu_custom_call.1} parent=63 // pred_check
          %p796 = pneg %p167
        $region74: #{tpu_custom_call.1} parent=63 // pred_check_branch
          %798 = sbr.rel (%p796) target = $region76
        $region75: #{tpu_custom_call.1} parent=63 // pred_region
          %s799 = sand.u32 %s31, 1
          %s800 = scalar_lea.sflag [#allocation9], %s799
          %s801 = sand.u32 %s152, 1
          %s802 = smul.addr %s801, 8
          %s803 = scalar_lea.vmem [#allocation10], %s802
          %804 = dma.done %s800, 128
        $region76: #{tpu_custom_call.1} parent=63 // pred_fallthru
          _
        // Predicated region
        $region77: #{tpu_custom_call.1} parent=63 // pred_check
          %p805 = pneg %p193
        $region78: #{tpu_custom_call.1} parent=63 // pred_check_branch
          %807 = sbr.rel (%p805) target = $region80
        $region79: #{tpu_custom_call.1} parent=63 // pred_region
          %s808 = sand.u32 %s178, 1
          %s809 = scalar_lea.sflag [#allocation12], %s808
          %s810 = sand.u32 %s178, 1
          %s811 = scalar_lea.vmem [#allocation11], %s810
          %812 = dma.done %s809, 16
        $region80: #{tpu_custom_call.1} parent=63 // pred_fallthru
          _
      $region64: #{tpu_custom_call.1} parent=5 // pred_fallthru
        _
    $region6: #{tpu_custom_call.1} parent=1 // loop_footer
      %s29 = sadd.s32 1, %s25
    $region7: #{tpu_custom_call.1} parent=1 // loop_footer_branch
      %24 = sbr.rel target = $region3
    $region8: #{tpu_custom_call.1} parent=1 // loop_exit
      _
    %813 = vsyncpa [#allocation3], 1
    %s814 = scalar_lea.sflag [#allocation3], 1
    %815 = vsyncpa %s814, 1
    %816 = vsyncpa [#allocation6], 1
    %817 = vsyncpa [#allocation4], 1
    %s818 = scalar_lea.sflag [#allocation4], 1
    %819 = vsyncpa %s818, 1
    %820 = vsyncpa [#allocation9], 1
    %s821 = scalar_lea.sflag [#allocation9], 1
    %822 = vsyncpa %s821, 1
    %823 = vsyncpa [#allocation12], 1
    %s824 = scalar_lea.sflag [#allocation12], 1
    %825 = vsyncpa %s824, 1

</llo_original>
